<compile_context>
chip_gen: v5e
topology: v5e:2x2
jax: 0.10.0
libtpu: 0.0.40
codegen_flags: <defaults>
</compile_context>

<pallas_src>
import jax
import jax.numpy as jnp
from jax.experimental import pallas as pl
from jax.experimental.pallas import tpu as pltpu


def make_positional_encoding(embed_dim: int, max_len: int = 10,
                             dtype=jnp.float32) -> jnp.ndarray:
    """Deterministic parameter setup (mirrors the PyTorch __init__)."""
    # TODO(synk): odd embed_dim has the same cos-column edge case as the
    # PyTorch original; even embed_dim assumed.
    position = jnp.arange(max_len, dtype=jnp.float32)[:, None]            # (max_len, 1)
    div_term = 1.0 / (10000.0 ** (jnp.arange(0, embed_dim, 2, dtype=jnp.float32)
                                  / embed_dim))                            # (embed_dim//2,)
    angles = position * div_term                                           # (max_len, embed_dim//2)
    pe = jnp.zeros((max_len, embed_dim), dtype=jnp.float32)
    pe = pe.at[:, 0::2].set(jnp.sin(angles))
    pe = pe.at[:, 1::2].set(jnp.cos(angles))
    # Note: casting pe to the activation dtype means the add runs in that
    # precision (PyTorch would promote bf16+f32 -> f32).  Fine for f32 here.
    return pe.astype(dtype)


def _add_pe_kernel(x_ref, pe_ref, o_ref):
    # x_ref/o_ref: (TB, TC) tile of the flattened (B, S*E) tensor.
    # pe_ref:      (1, TC) tile of the flattened pe, broadcast over rows.
    o_ref[...] = x_ref[...] + pe_ref[...]


def _generation_params():
    """(block budget bytes, vmem limit bytes, min grid steps) per TPU gen."""
    try:
        kind = jax.devices()[0].device_kind.lower()
    except Exception:
        kind = ""
    if "v7" in kind:
        # 3.2 TB/s HBM per TC: bigger blocks amortize per-step overhead, and
        # >=4 grid steps let both TensorCores stream (dimension_semantics
        # "parallel" shards the grid).  2x8 MiB x + 2x8 MiB out + pe << 48 MiB.
        return 8 * 1024 * 1024, 48 * 1024 * 1024, 4
    # v5e/v6e: single TC; 4 MiB blocks keep per-step overhead <~6% and the
    # explicit 40 MiB limit clears v5e's 16 MiB default scoped-VMEM budget.
    return 4 * 1024 * 1024, 40 * 1024 * 1024, 1


def _choose_tiles(B: int, F: int, itemsize: int,
                  budget_bytes: int, min_blocks: int):
    """Pick (TB, TC) such that:
      * TB is the full batch or a multiple of the dtype sublane granularity,
      * TC is the full row or a multiple of 128 (lane-dense),
      * TB*TC*itemsize <= budget_bytes,
      * grid (cdiv) has at least `min_blocks` steps when possible."""
    sub = max(8, 32 // max(1, itemsize))   # 8 for f32, 16 for bf16, 32 for i8/fp8

    if B * F * itemsize <= budget_bytes:
        tb, tc = B, F                                    # whole array, one block
    elif F * itemsize * sub <= budget_bytes:
        tc = F                                           # whole rows fit
        rows = budget_bytes // (F * itemsize)
        tb = min(B, max(sub, (rows // sub) * sub))
    else:
        tb = min(B, sub)                                 # rows too long: tile lanes
        tc = max(128, (budget_bytes // (tb * itemsize)) // 128 * 128)

    def nblocks(tb_, tc_):
        return pl.cdiv(B, tb_) * pl.cdiv(F, tc_)

    # Guarantee enough grid steps to occupy every core (v7x megacore).
    while nblocks(tb, tc) < min_blocks:
        if tb > sub:
            tb = max(sub, ((tb + 1) // 2 // sub) * sub)
        elif tc > 128:
            tc = max(128, ((tc + 1) // 2 // 128) * 128)
        else:
            break
    return tb, tc


def positional_encoding_forward(x: jnp.ndarray, pe: jnp.ndarray) -> jnp.ndarray:
    """x: (B, S, E), pe: (S, E) -> (B, S, E); computes x + pe."""
    B, S, E = x.shape
    assert pe.shape == (S, E), "sequence length must equal max_len (as in the PyTorch module)"

    F = S * E
    itemsize = jnp.dtype(x.dtype).itemsize
    x2 = x.reshape(B, F)                                  # lane-dense layout (free)
    if pe.dtype != x.dtype:                               # normally hoisted to init
        pe = pe.astype(x.dtype)
    pe2 = pe.reshape(1, F)

    budget, vmem_limit, min_blocks = _generation_params()
    TB, TC = _choose_tiles(B, F, itemsize, budget, min_blocks)
    # Column axis OUTER, batch axis INNER: pe's block index is constant across
    # consecutive (inner) steps, so its tile stays resident in VMEM.
    grid = (pl.cdiv(F, TC), pl.cdiv(B, TB))

    out = pl.pallas_call(
        _add_pe_kernel,
        out_shape=jax.ShapeDtypeStruct((B, F), x.dtype),
        grid_spec=pltpu.PrefetchScalarGridSpec(
            num_scalar_prefetch=0,
            grid=grid,
            in_specs=[
                pl.BlockSpec((TB, TC), lambda j, i: (i, j)),   # x tile
                pl.BlockSpec((1, TC), lambda j, i: (0, j)),    # pe tile: resident over batch
            ],
            out_specs=pl.BlockSpec((TB, TC), lambda j, i: (i, j)),
        ),
        compiler_params=pltpu.CompilerParams(
            dimension_semantics=("parallel", "parallel"),
            vmem_limit_bytes=vmem_limit,
        ),
        cost_estimate=pl.CostEstimate(
            flops=B * F,
            transcendentals=0,
            bytes_accessed=2 * B * F * itemsize + F * itemsize,
        ),
        input_output_aliases={0: 0},   # in-place: out aliases x2's buffer
    )(x2, pe2)
    return out.reshape(B, S, E)


if __name__ == "__main__":
    batch = 2
    max_len = 8       # sequence length must equal max_len (as in the PyTorch module)
    embed_dim = 32

    key = jax.random.PRNGKey(0)
    x = jax.random.normal(key, (batch, max_len, embed_dim), dtype=jnp.float32)

    pe = make_positional_encoding(embed_dim, max_len, dtype=x.dtype)

    # Reference computed before the kernel call (the output aliases x's buffer).
    ref = x + pe[None, :, :]

    out = positional_encoding_forward(x, pe)
    out = jax.block_until_ready(out)

    assert out.shape == x.shape
    assert jnp.allclose(out, ref, atol=1e-6, rtol=1e-6), "mismatch vs reference"

    print("KERNEL_OK")
</pallas_src>

<mosaic_0001>
module attributes {stable_mosaic.version = 11 : i64} {
  func.func @_add_pe_kernel(%arg0: i32, %arg1: i32, %arg2: memref<2x256xf32, #tpu.memory_space<vmem>>, %arg3: memref<1x256xf32, #tpu.memory_space<vmem>>, %arg4: memref<2x256xf32, #tpu.memory_space<vmem>>) attributes {dimension_semantics = [#tpu.dimension_semantics<parallel>, #tpu.dimension_semantics<parallel>], iteration_bounds = array<i64: 1, 1>, scalar_prefetch = 0 : i64, scratch_operands = 0 : i64, tpu.core_type = #tpu.core_type<tc>, window_params = [{transform_indices = @transform_0, window_bounds = array<i64: 2, 256>}, {transform_indices = @transform_1, window_bounds = array<i64: 1, 256>}, {transform_indices = @transform_2, window_bounds = array<i64: 2, 256>}]} {
    %c0 = arith.constant 0 : index
    %c0_0 = arith.constant 0 : index
    %0 = vector.load %arg2[%c0, %c0_0] : memref<2x256xf32, #tpu.memory_space<vmem>>, vector<2x256xf32>
    %c0_1 = arith.constant 0 : index
    %c0_2 = arith.constant 0 : index
    %1 = vector.load %arg3[%c0_1, %c0_2] : memref<1x256xf32, #tpu.memory_space<vmem>>, vector<1x256xf32>
    %2 = vector.broadcast %1 : vector<1x256xf32> to vector<2x256xf32>
    %3 = arith.addf %0, %2 : vector<2x256xf32>
    %c0_3 = arith.constant 0 : index
    %c0_4 = arith.constant 0 : index
    %4 = vector.load %arg4[%c0_3, %c0_4] : memref<2x256xf32, #tpu.memory_space<vmem>>, vector<2x256xf32>
    tpu.vector_store %arg4[%c0_3, %c0_4], %3 {strides = array<i32>} : memref<2x256xf32, #tpu.memory_space<vmem>>, vector<2x256xf32>,
    return
  }
  func.func @transform_0(%arg0: i32, %arg1: i32) -> (i32, i32) {
    %c0_i32 = arith.constant 0 : i32
    return %arg1, %arg0 : i32, i32
  }
  func.func @transform_1(%arg0: i32, %arg1: i32) -> (i32, i32) {
    %c0_i32 = arith.constant 0 : i32
    %c0_i32_0 = arith.constant 0 : i32
    return %c0_i32, %arg0 : i32, i32
  }
  func.func @transform_2(%arg0: i32, %arg1: i32) -> (i32, i32) {
    %c0_i32 = arith.constant 0 : i32
    return %arg1, %arg0 : i32, i32
  }
}

</mosaic_0001>

<llo_original>
// kernel: tpu_custom_call.1
$region0: #{tpu_custom_call.1}
  #allocation0 [shape = 'u32[]', space=smem, size = 0x4, offset = 0x4, fixed_abs, tag = 'smem constant byte address 0x4 - core index']
  #allocation1 [shape = 'u32[72,128]{1,0:T(1,128)}', space=vmem, size = 0x9000, scoped, tag = 'internal scratch']
  %s0 = inlined_call_operand.hbm [shape: f32[2,256], index: 0, kind: input, shape index: {}, may-alias: {0,2}]
  %s1 = inlined_call_operand.vmem [shape: f32[1,256], index: 1, kind: input, shape index: {}]
  %s2 = inlined_call_operand.hbm [shape: f32[2,256], index: 2, kind: output, shape index: {}, may-alias: {0,2}]
  %s3 = sld [smem:[#allocation0]]
  $region22: #{tpu_custom_call.1} parent=0
    _
  %s5 = ssub.s32 1, %s3
  %s6 = scalar_select 0, %s5, %s3
  $region1: #{tpu_custom_call.1} parent=0
    #allocation2 [shape = 'u8[2048]{0}', space=vmem, size = 0x800, scoped, tag = 'input window, operand 0, single buffered']
    #allocation3 [shape = 's32[1]{0}', space=sflag, size = 0x4, scoped, tag = 'scoped memory for tpu_custom_call.1']
    #allocation4 [shape = 's32[1]{0}', space=sflag, size = 0x4, scoped, tag = 'scoped memory for tpu_custom_call.1']
    #allocation5 [shape = 'u8[2048]{0}', space=vmem, size = 0x800, scoped, tag = 'output window, operand 0, single buffered']
    %7 = vsyncpa [#allocation3], 0
    %8 = vsyncpa [#allocation4], 0
    // Predicated region
    $region2: #{tpu_custom_call.1} parent=1 // pred_check
      _
    $region3: #{tpu_custom_call.1} parent=1 // pred_check_branch
      %10 = sbr.rel (0) target = $region5
    $region4: #{tpu_custom_call.1} parent=1 // pred_region
      %12 = vsyncadd [#allocation3], 0
      %s14 = sshll.u32 %s0, 4
      %s15 = int_to_ptr.hbm [resolvable:$true] %s14
      %s16 = sshll.u32 [#allocation2], 4
      %s17 = int_to_ptr.vmem [resolvable:$true] %s16
      %19 = dma.hbm_to_vmem [thread:$0]  %s15, 64, %s17, [#allocation3]
    $region5: #{tpu_custom_call.1} parent=1 // pred_fallthru
      _
    // Predicated region
    $region6: #{tpu_custom_call.1} parent=1 // pred_check
      _
    $region7: #{tpu_custom_call.1} parent=1 // pred_check_branch
      %21 = sbr.rel (0) target = $region9
    $region8: #{tpu_custom_call.1} parent=1 // pred_region
      _
    $region9: #{tpu_custom_call.1} parent=1 // pred_fallthru
      _
    // Predicated region
    $region10: #{tpu_custom_call.1} parent=1 // pred_check
      _
    $region11: #{tpu_custom_call.1} parent=1 // pred_check_branch
      %23 = sbr.rel (0) target = $region13
    $region12: #{tpu_custom_call.1} parent=1 // pred_region
      %25 = dma.done [#allocation3], 64
    $region13: #{tpu_custom_call.1} parent=1 // pred_fallthru
      _
    %v26 = vld [vmem:[#allocation2] sm:$0xf]
    %v27 = vld [vmem:[%s1] sm:$0x3]
    %v29 = vperm.slane %v27, 0
    %v30 = vperm.slane %v27, 1
    %v31 = vrot.slane %v30, 6
    %vm32 = vcmask 1041408
    %v33 = vsel %vm32, %v29, %v31
    %v35 = vadd.f32 %v26, %v33
    %36 = vst [vmem:[#allocation5] sm:$0xf] %v35
    // Predicated region
    $region14: #{tpu_custom_call.1} parent=1 // pred_check
      _
    $region15: #{tpu_custom_call.1} parent=1 // pred_check_branch
      %38 = sbr.rel (0) target = $region17
    $region16: #{tpu_custom_call.1} parent=1 // pred_region
      %40 = vsyncadd [#allocation4], 0
      %s42 = sshll.u32 [#allocation5], 4
      %s43 = int_to_ptr.vmem [resolvable:$true] %s42
      %s44 = sshll.u32 %s2, 4
      %s45 = int_to_ptr.hbm [resolvable:$true] %s44
      %47 = dma.vmem_to_hbm [thread:$0]  %s43, 64, %s45, [#allocation4]
    $region17: #{tpu_custom_call.1} parent=1 // pred_fallthru
      _
    // Predicated region
    $region18: #{tpu_custom_call.1} parent=1 // pred_check
      _
    $region19: #{tpu_custom_call.1} parent=1 // pred_check_branch
      %49 = sbr.rel (0) target = $region21
    $region20: #{tpu_custom_call.1} parent=1 // pred_region
      %51 = dma.done [#allocation4], 64
    $region21: #{tpu_custom_call.1} parent=1 // pred_fallthru
      _
    %52 = vsyncpa [#allocation3], 1
    %53 = vsyncpa [#allocation4], 1

</llo_original>
